<compile_context>
chip_gen: v6e
topology: v6e:2x2x1
jax: 0.10.0
libtpu: 0.0.40
codegen_flags: <defaults>
</compile_context>

<pallas_src>
from functools import lru_cache

import numpy as np
import jax
import jax.numpy as jnp
from jax.experimental import pallas as pl
from jax.experimental.pallas import tpu as pltpu

MAX_LENGTH = 80          # tokenizer(..., max_length=80, truncation=True)
PREFIX = "summarize:"    # default forward() prefix
BOS_ID = 1               # Llama <s>
EOS_ID = 2               # Llama </s>  (add_eos_token = True)
CAP = 128                # lane-aligned token capacity (>= 80); output width
TB_MAX = 4096            # max rows per grid block (int16: 1 MiB per block)


def _char_to_id(c: str) -> int:
    # deterministic synthetic vocab: char -> id >= 3 (0/1/2 reserved), < 32768
    return (ord(c) % 29000) + 3


PAD_ID = _char_to_id(" ")  # module sets tokenizer.pad_token = ' '


def synthetic_tokenize(text: str):
    # TODO(synk): real LlamaTokenizer (SentencePiece BPE) is host-side string
    # processing with no Pallas equivalent; replaced by a deterministic
    # per-character mapping.
    return [_char_to_id(c) for c in text]


def _round_up(x: int, m: int) -> int:
    return ((x + m - 1) // m) * m


def _choose_tiling(B: int):
    """Bucketed padded-batch size + block rows.

    Returns (Bp, TB) with TB | Bp, both multiples of 16, and TB <= TB_MAX.
    Power-of-two bucketing keeps the set of compiled shapes tiny; Bp >= 32
    is split into >= 2 blocks so v7x's two TensorCores both get work.
    """
    B = max(B, 1)
    if B <= TB_MAX:
        Bp = max(16, 1 << (B - 1).bit_length())        # next power of two >= 16
        TB = Bp // 2 if Bp >= 32 else Bp               # >= 2 blocks when possible
        TB = min(TB, TB_MAX)
    else:
        Bp = _round_up(B, TB_MAX)
        TB = TB_MAX
    return Bp, TB


def _pack_kernel(toks_ref, out_ref):
    # toks_ref: (TB, CAP) int16.
    #   lane 0         : free (reserved for BOS)
    #   lanes 1..len   : content tokens (pre-shifted on host), len <= 78
    #   lane CAP-1     : content length (>= 0), or < 0 for batch-padding rows
    #   everything else: PAD_ID
    # out_ref : (TB, CAP) int16, [BOS, toks..., EOS, PAD...] per valid row,
    #           all-PAD for padding rows.
    toks = toks_ref[...].astype(jnp.int32)                      # (TB, CAP)
    TB, L = toks.shape
    lens = toks[:, CAP - 1:CAP]                                 # (TB, 1)
    col = jax.lax.broadcasted_iota(jnp.int32, (TB, L), 1)       # (TB, CAP)
    body = jnp.where(
        col == 0,
        BOS_ID,
        jnp.where(
            col <= lens,
            toks,
            jnp.where(col == lens + 1, EOS_ID, PAD_ID),
        ),
    )
    out = jnp.where(lens < 0, PAD_ID, body)                     # pad rows -> all PAD
    out_ref[...] = out.astype(jnp.int16)


@lru_cache(maxsize=None)
def _build_pack_call(Bp: int, TB: int):
    return pl.pallas_call(
        _pack_kernel,
        out_shape=jax.ShapeDtypeStruct((Bp, CAP), jnp.int16),
        grid=(Bp // TB,),
        in_specs=[pl.BlockSpec((TB, CAP), lambda i: (i, 0))],
        out_specs=pl.BlockSpec((TB, CAP), lambda i: (i, 0)),
        input_output_aliases={0: 0},   # write result in place over the staging buffer
        compiler_params=pltpu.CompilerParams(
            dimension_semantics=("parallel",)),
    )


def internvl_tokenize_padded(text, prefix: str = PREFIX):
    """Device-side packing. Returns (ids_padded, B, L).

    ids_padded: (Bp, CAP) int16 device array; valid ids live in [:B, :L];
    rows >= B are all PAD_ID.
    """
    if isinstance(text, str):
        texts = [prefix + text]
    else:
        texts = [prefix + t for t in text]

    B = len(texts)
    if B == 0:
        return jnp.zeros((0, CAP), jnp.int16), 0, 0

    # host-side "tokenization" + truncation budget (max_length - BOS - EOS)
    tok_lists = [synthetic_tokenize(t)[: MAX_LENGTH - 2] for t in texts]
    lens = np.array([len(t) for t in tok_lists], dtype=np.int32)
    # padding=True -> pad to longest (incl. the 2 specials), capped at 80
    L = int(min(MAX_LENGTH, int(lens.max()) + 2))

    Bp, TB = _choose_tiling(B)

    # pack into a lane-aligned int16 buffer: lane 0 reserved for BOS, content
    # at lanes 1..len, content length stashed in lane CAP-1 (negative marks
    # batch-padding rows).
    buf = np.full((Bp, CAP), PAD_ID, dtype=np.int16)
    for i, toks in enumerate(tok_lists):
        buf[i, 1: 1 + len(toks)] = toks
    buf[:B, CAP - 1] = lens.astype(np.int16)
    buf[B:, CAP - 1] = -1

    call = _build_pack_call(Bp, TB)
    out = call(jnp.asarray(buf))        # (Bp, CAP) int16, lane-dense stores
    return out, B, L


def internvl_tokenize(text, prefix: str = PREFIX):
    """Mirrors InternVLTokenizer.forward(text, prefix): returns (B, L) ids.

    The trim to (B, L) is done on the host (numpy) after the device fetch to
    avoid a shape-dependent device slice op per call.
    """
    out, B, L = internvl_tokenize_padded(text, prefix)
    if B == 0:
        return np.zeros((0, 0), dtype=np.int16)
    out = jax.block_until_ready(out)
    return np.asarray(out)[:B, :L]


if __name__ == "__main__":
    # deterministic synthetic "text" inputs from PRNGKey(0)
    key = jax.random.PRNGKey(0)
    k_len, k_chr = jax.random.split(key)
    n_texts = 3
    max_chars = 120
    txt_lens = np.asarray(jax.random.randint(k_len, (n_texts,), 5, max_chars))
    txt_chars = np.asarray(
        jax.random.randint(k_chr, (n_texts, max_chars), 97, 123)  # 'a'..'z'
    )
    texts = [
        "".join(chr(int(c)) for c in txt_chars[i, : int(txt_lens[i])])
        for i in range(n_texts)
    ]

    # run the kernel once and block on the device result
    ids_padded, B, L = internvl_tokenize_padded(texts)
    ids_padded = jax.block_until_ready(ids_padded)
    input_ids = np.asarray(ids_padded)[:B, :L]      # host-side consumer slice

    # pure-numpy reference of the same semantics (truncate / BOS / EOS / pad-longest)
    ref_tok_lists = [synthetic_tokenize(PREFIX + t)[: MAX_LENGTH - 2] for t in texts]
    ref_L = min(MAX_LENGTH, max(len(t) for t in ref_tok_lists) + 2)
    ref = np.array(
        [
            [BOS_ID] + toks + [EOS_ID] + [PAD_ID] * (ref_L - len(toks) - 2)
            for toks in ref_tok_lists
        ],
        dtype=np.int16,
    )

    assert input_ids.shape == ref.shape, (input_ids.shape, ref.shape)
    assert np.array_equal(input_ids, ref)
    # batch-padding rows must be pure PAD (safe to consume the full array)
    assert np.all(np.asarray(ids_padded)[B:] == PAD_ID)
    print("KERNEL_OK")
</pallas_src>

<mosaic_0001>
module attributes {stable_mosaic.version = 11 : i64} {
  func.func @_pack_kernel(%arg0: i32, %arg1: memref<16x128xi16, #tpu.memory_space<vmem>>, %arg2: memref<16x128xi16, #tpu.memory_space<vmem>>) attributes {dimension_semantics = [#tpu.dimension_semantics<parallel>], iteration_bounds = array<i64: 1>, scalar_prefetch = 0 : i64, scratch_operands = 0 : i64, tpu.core_type = #tpu.core_type<tc>, window_params = [{transform_indices = @transform_0, window_bounds = array<i64: 16, 128>}, {transform_indices = @transform_1, window_bounds = array<i64: 16, 128>}]} {
    %c0 = arith.constant 0 : index
    %c0_0 = arith.constant 0 : index
    %0 = vector.load %arg1[%c0, %c0_0] : memref<16x128xi16, #tpu.memory_space<vmem>>, vector<16x128xi16>
    %1 = arith.extsi %0 : vector<16x128xi16> to vector<16x128xi32>
    %2 = vector.extract_strided_slice %1 {offsets = [0, 127], sizes = [16, 1], strides = [1, 1]} : vector<16x128xi32> to vector<16x1xi32>
    %3 = tpu.iota {dimensions = array<i32: 1>} : vector<16x128xi32>
    %c0_i32 = arith.constant 0 : i32
    %4 = vector.broadcast %c0_i32 : i32 to vector<16x128xi32>
    %5 = arith.cmpi eq, %3, %4 : vector<16x128xi32>
    %6 = vector.broadcast %2 : vector<16x1xi32> to vector<16x128xi32>
    %7 = arith.cmpi sle, %3, %6 : vector<16x128xi32>
    %c1_i32 = arith.constant 1 : i32
    %8 = vector.broadcast %c1_i32 : i32 to vector<16x1xi32>
    %9 = arith.addi %2, %8 : vector<16x1xi32>
    %10 = vector.broadcast %9 : vector<16x1xi32> to vector<16x128xi32>
    %11 = arith.cmpi eq, %3, %10 : vector<16x128xi32>
    %c2_i32 = arith.constant 2 : i32
    %c35_i32 = arith.constant 35 : i32
    %12 = vector.broadcast %c2_i32 : i32 to vector<16x128xi32>
    %13 = vector.broadcast %c35_i32 : i32 to vector<16x128xi32>
    %14 = arith.select %11, %12, %13 : vector<16x128xi1>, vector<16x128xi32>
    %15 = arith.select %7, %1, %14 : vector<16x128xi1>, vector<16x128xi32>
    %c1_i32_1 = arith.constant 1 : i32
    %16 = vector.broadcast %c1_i32_1 : i32 to vector<16x128xi32>
    %17 = arith.select %5, %16, %15 : vector<16x128xi1>, vector<16x128xi32>
    %c0_i32_2 = arith.constant 0 : i32
    %18 = vector.broadcast %c0_i32_2 : i32 to vector<16x1xi32>
    %19 = arith.cmpi slt, %2, %18 : vector<16x1xi32>
    %c35_i32_3 = arith.constant 35 : i32
    %20 = vector.shape_cast %19 : vector<16x1xi1> to vector<16x1xi1>
    %21 = vector.broadcast %20 : vector<16x1xi1> to vector<16x128xi1>
    %22 = vector.broadcast %c35_i32_3 : i32 to vector<16x128xi32>
    %23 = arith.select %21, %22, %17 : vector<16x128xi1>, vector<16x128xi32>
    %24 = arith.trunci %23 : vector<16x128xi32> to vector<16x128xi16>
    %c0_4 = arith.constant 0 : index
    %c0_5 = arith.constant 0 : index
    %25 = vector.load %arg2[%c0_4, %c0_5] : memref<16x128xi16, #tpu.memory_space<vmem>>, vector<16x128xi16>
    tpu.vector_store %arg2[%c0_4, %c0_5], %24 {strides = array<i32>} : memref<16x128xi16, #tpu.memory_space<vmem>>, vector<16x128xi16>,
    return
  }
  func.func @transform_0(%arg0: i32) -> (i32, i32) {
    %c0_i32 = arith.constant 0 : i32
    %c0_i32_0 = arith.constant 0 : i32
    return %arg0, %c0_i32 : i32, i32
  }
  func.func @transform_1(%arg0: i32) -> (i32, i32) {
    %c0_i32 = arith.constant 0 : i32
    %c0_i32_0 = arith.constant 0 : i32
    return %arg0, %c0_i32 : i32, i32
  }
}

</mosaic_0001>

<llo_original>
// kernel: tpu_custom_call.1
$region0: #{tpu_custom_call.1}
  #allocation0 [shape = 'u32[]', space=smem, size = 0x4, offset = 0x4, fixed_abs, tag = 'smem constant byte address 0x4 - core index']
  #allocation1 [shape = 'u32[144,128]{1,0:T(1,128)}', space=vmem, size = 0x12000, scoped, tag = 'internal scratch']
  %s0 = inlined_call_operand.hbm [shape: s16[16,128], index: 0, kind: input, shape index: {}, may-alias: {0,1}]
  %s1 = inlined_call_operand.hbm [shape: s16[16,128], index: 1, kind: output, shape index: {}, may-alias: {0,1}]
  %s2 = sld [smem:[#allocation0]]
  $region18: #{tpu_custom_call.1} parent=0
    _
  %s4 = ssub.s32 1, %s2
  %s5 = scalar_select 0, %s4, %s2
  $region1: #{tpu_custom_call.1} parent=0
    #allocation2 [shape = 'u8[4096]{0}', space=vmem, size = 0x1000, scoped, tag = 'input window, operand 0, single buffered']
    #allocation3 [shape = 's32[1]{0}', space=sflag, size = 0x4, scoped, tag = 'scoped memory for tpu_custom_call.1']
    #allocation4 [shape = 's32[1]{0}', space=sflag, size = 0x4, scoped, tag = 'scoped memory for tpu_custom_call.1']
    #allocation5 [shape = 'u8[4096]{0}', space=vmem, size = 0x1000, scoped, tag = 'output window, operand 0, single buffered']
    %6 = vsyncpa [#allocation3], 0
    %7 = vsyncpa [#allocation4], 0
    // Predicated region
    $region2: #{tpu_custom_call.1} parent=1 // pred_check
      _
    $region3: #{tpu_custom_call.1} parent=1 // pred_check_branch
      %9 = sbr.rel (0) target = $region5
    $region4: #{tpu_custom_call.1} parent=1 // pred_region
      %s11 = ssub.s32 128, 128
      %12 = vsyncadd [#allocation3], %s11
      %s13 = sshll.u32 [#allocation2], 4
      %s14 = int_to_ptr.vmem [resolvable:$true] %s13
      %19 = dma.hbm_to_vmem [thread:$0]  %s0, 128, %s14, [#allocation3], 64, 64, 4
    $region5: #{tpu_custom_call.1} parent=1 // pred_fallthru
      _
    // Predicated region
    $region6: #{tpu_custom_call.1} parent=1 // pred_check
      _
    $region7: #{tpu_custom_call.1} parent=1 // pred_check_branch
      %21 = sbr.rel (0) target = $region9
    $region8: #{tpu_custom_call.1} parent=1 // pred_region
      %22 = dma.done [#allocation3], 128
    $region9: #{tpu_custom_call.1} parent=1 // pred_fallthru
      _
    %v23 = vld [vmem:[#allocation2] sm:$0xf]
    %v24 = vld [vmem:[#allocation2 + $0x4] sm:$0xf]
    %v25 = vunpack.c.l.b16 %v23
    %v26 = vunpack.c.l.b16 %v24
    %v27 = vlaneseq
    %v28 = vand.u32 %v27, 127
    %vm29 = vcmp.eq.s32.totalorder %v28, 0
    %30 = vset.pattern.permute.xlu0 127
    %31 = vperm.xlu0 %30, %v25
    %v32 = vpop.permute.xlu0 %31
    %33 = vset.pattern.permute.xlu0 127
    %34 = vperm.xlu0 %33, %v26
    %v35 = vpop.permute.xlu0 %34
    %vm36 = vcmp.le.s32.totalorder %v28, %v32
    %vm37 = vcmp.le.s32.totalorder %v28, %v35
    %v38 = vadd.s32 %v25, 1
    %v39 = vadd.s32 %v26, 1
    %40 = vset.pattern.permute.xlu0 127
    %41 = vperm.xlu0 %40, %v38
    %v42 = vpop.permute.xlu0 %41
    %43 = vset.pattern.permute.xlu0 127
    %44 = vperm.xlu0 %43, %v39
    %v45 = vpop.permute.xlu0 %44
    %vm46 = vcmp.eq.s32.totalorder %v28, %v42
    %vm47 = vcmp.eq.s32.totalorder %v28, %v45
    %v48 = vsel %vm46, 2, 35
    %v49 = vsel %vm47, 2, 35
    %v50 = vsel %vm36, %v25, %v48
    %v51 = vsel %vm37, %v26, %v49
    %v52 = vsel %vm29, 1, %v50
    %v53 = vsel %vm29, 1, %v51
    %vm54 = vcmp.lt.s32.totalorder %v25, 0
    %vm55 = vcmp.lt.s32.totalorder %v26, 0
    %v56 = vsel %vm54, 1, 0
    %v57 = vsel %vm55, 1, 0
    %58 = vset.pattern.permute.xlu0 127
    %59 = vperm.xlu0 %58, %v56
    %v60 = vpop.permute.xlu0 %59
    %61 = vset.pattern.permute.xlu0 127
    %62 = vperm.xlu0 %61, %v57
    %v63 = vpop.permute.xlu0 %62
    %vm64 = vcmp.eq.s32.totalorder %v60, 1
    %vm65 = vcmp.eq.s32.totalorder %v63, 1
    %v66 = vsel %vm64, 35, %v52
    %v67 = vsel %vm65, 35, %v53
    %v68 = vpack.c.b16 %v66, %v66
    %v69 = vpack.c.b16 %v67, %v67
    %70 = vst [vmem:[#allocation5] sm:$0xf] %v68
    %71 = vst [vmem:[#allocation5 + $0x4] sm:$0xf] %v69
    // Predicated region
    $region10: #{tpu_custom_call.1} parent=1 // pred_check
      _
    $region11: #{tpu_custom_call.1} parent=1 // pred_check_branch
      %73 = sbr.rel (0) target = $region13
    $region12: #{tpu_custom_call.1} parent=1 // pred_region
      %s75 = ssub.s32 128, 128
      %76 = vsyncadd [#allocation4], %s75
      %s77 = sshll.u32 [#allocation5], 4
      %s78 = int_to_ptr.vmem [resolvable:$true] %s77
      %83 = dma.vmem_to_hbm [thread:$0]  %s78, 128, %s1, [#allocation4], 64, 64, 4
    $region13: #{tpu_custom_call.1} parent=1 // pred_fallthru
      _
    // Predicated region
    $region14: #{tpu_custom_call.1} parent=1 // pred_check
      _
    $region15: #{tpu_custom_call.1} parent=1 // pred_check_branch
      %85 = sbr.rel (0) target = $region17
    $region16: #{tpu_custom_call.1} parent=1 // pred_region
      %86 = dma.done [#allocation4], 128
    $region17: #{tpu_custom_call.1} parent=1 // pred_fallthru
      _
    %87 = vsyncpa [#allocation3], 1
    %88 = vsyncpa [#allocation4], 1

</llo_original>
